<compile_context>
chip_gen: v7x
topology: tpu7x:2x2x1
jax: 0.10.0
libtpu: 0.0.40
codegen_flags: <defaults>
</compile_context>

<pallas_src>
import jax
import jax.numpy as jnp
from jax.experimental import pallas as pl
from jax.experimental.pallas import tpu as pltpu


_LANE = 128  # pad classifier head to a lane-dense output width


def _round_up(x, m):
    return ((x + m - 1) // m) * m


def _ceil_div(a, b):
    return -(-a // b)


def _mlp_kernel(x_ref, w1_ref, b1_ref, w2_ref, b2_ref, o_ref):
    # In-kernel f32 -> bf16 cast of the activation tile (avoids a separate
    # XLA convert pass over x in HBM).
    x_bf = x_ref[...].astype(jnp.bfloat16)
    # Hidden layer: [TM, D](bf16) @ [D, H](bf16) -> f32 acc, bias+ReLU in f32.
    h = jnp.dot(x_bf, w1_ref[...], preferred_element_type=jnp.float32)
    h = jnp.maximum(h + b1_ref[...], 0.0)
    # Dropout(p=0.3) is identity at inference.
    # Output layer kept fully in f32 (tiny matmul, kernel is mem-bound).
    out = jnp.dot(h, w2_ref[...], preferred_element_type=jnp.float32)
    o_ref[...] = (out + b2_ref[...]).astype(o_ref.dtype)


def emotion_classifier_forward(x, w1, b1, w2, b2, *, tm=1024):
    """Pallas forward pass (inference).

    x  : [B, input_dim]        float32 (cast to bf16 inside the kernel)
    w1 : [input_dim, 128]      float32 (stored transposed vs torch; cast bf16)
    b1 : [1, 128]              float32
    w2 : [128, num_classes]    float32 (zero-padded to 128 cols, kept f32)
    b2 : [1, num_classes]      float32 (zero-padded to 128 cols)
    returns logits [B, num_classes] float32
    """
    B, D = x.shape
    H = w1.shape[1]
    C = w2.shape[1]

    # --- lane-dense classifier head: pad output columns to 128 ---------------
    c_pad = max(_LANE, _round_up(C, _LANE))
    w2_p = jnp.zeros((H, c_pad), jnp.float32).at[:, :C].set(w2.astype(jnp.float32))
    b2_p = jnp.zeros((1, c_pad), jnp.float32).at[:, :C].set(b2.astype(jnp.float32))

    # --- balanced batch tiles, no host-side padding ---------------------------
    # At least 2 grid steps when B >= 256 so the "parallel" axis can shard
    # across both TensorCores on v7x; the last tile may be ragged (Pallas
    # masks out-of-bounds reads/writes), so no jnp.pad copy of x is needed.
    n_tiles = _ceil_div(B, tm)
    if B >= 256:
        n_tiles = max(n_tiles, 2)
    tm_eff = _round_up(_ceil_div(B, n_tiles), 16)   # sublane-safe for f32 & bf16
    grid = (_ceil_div(B, tm_eff),)

    w1_bf = w1.astype(jnp.bfloat16)
    b1_f = b1.astype(jnp.float32).reshape(1, H)
    x_f = x.astype(jnp.float32)

    flops = 2 * B * D * H + 2 * B * H * c_pad
    bytes_accessed = (B * D * 4 + D * H * 2 + H * 4
                      + H * c_pad * 4 + c_pad * 4 + B * c_pad * 2)

    out_p = pl.pallas_call(
        _mlp_kernel,
        out_shape=jax.ShapeDtypeStruct((B, c_pad), jnp.bfloat16),
        grid=grid,
        in_specs=[
            pl.BlockSpec((tm_eff, D), lambda i: (i, 0)),   # x (f32): walks batch
            pl.BlockSpec((D, H), lambda i: (0, 0)),        # w1 (bf16): resident
            pl.BlockSpec((1, H), lambda i: (0, 0)),        # b1 (f32): resident
            pl.BlockSpec((H, c_pad), lambda i: (0, 0)),    # w2 (f32): resident
            pl.BlockSpec((1, c_pad), lambda i: (0, 0)),    # b2 (f32): resident
        ],
        out_specs=pl.BlockSpec((tm_eff, c_pad), lambda i: (i, 0)),
        compiler_params=pltpu.CompilerParams(
            dimension_semantics=("parallel",),
        ),
        cost_estimate=pl.CostEstimate(
            flops=flops, transcendentals=0, bytes_accessed=bytes_accessed),
    )(x_f, w1_bf, b1_f, w2_p, b2_p)

    # Tiny [B, C] slice; cast back to f32 to match the module's output dtype.
    return out_p[:, :C].astype(jnp.float32)


def init_params(key, input_dim=768, hidden=128, num_classes=4):
    """Deterministic synthetic init matching nn.Linear shapes (stored transposed)."""
    k1, k2, k3, k4 = jax.random.split(key, 4)
    bound1 = 1.0 / jnp.sqrt(input_dim)
    bound2 = 1.0 / jnp.sqrt(hidden)
    w1 = jax.random.uniform(k1, (input_dim, hidden), jnp.float32, -bound1, bound1)
    b1 = jax.random.uniform(k2, (1, hidden), jnp.float32, -bound1, bound1)
    w2 = jax.random.uniform(k3, (hidden, num_classes), jnp.float32, -bound2, bound2)
    b2 = jax.random.uniform(k4, (1, num_classes), jnp.float32, -bound2, bound2)
    return w1, b1, w2, b2


if __name__ == "__main__":
    key = jax.random.PRNGKey(0)
    kx, kp = jax.random.split(key)

    B, input_dim, hidden, num_classes = 16, 768, 128, 4
    x = jax.random.normal(kx, (B, input_dim), jnp.float32)
    w1, b1, w2, b2 = init_params(kp, input_dim, hidden, num_classes)

    logits = emotion_classifier_forward(x, w1, b1, w2, b2)
    jax.block_until_ready(logits)
    assert logits.shape == (B, num_classes)
    assert logits.dtype == jnp.float32

    # Reference in plain JAX, emulating the kernel's bf16-in / f32-acc path
    # (bf16 only on the first matmul's inputs; head stays f32; bf16 output).
    x_e = x.astype(jnp.bfloat16).astype(jnp.float32)
    w1_e = w1.astype(jnp.bfloat16).astype(jnp.float32)
    h_ref = jnp.maximum(x_e @ w1_e + b1, 0.0)
    ref = (h_ref @ w2 + b2).astype(jnp.bfloat16).astype(jnp.float32)
    assert jnp.allclose(logits, ref, atol=1e-2, rtol=1e-2)

    # Also sanity-check against the pure-f32 reference with loose tolerance.
    ref_f32 = jnp.maximum(x @ w1 + b1, 0.0) @ w2 + b2
    assert jnp.allclose(logits, ref_f32, atol=5e-2, rtol=5e-2)

    print("KERNEL_OK")
</pallas_src>

<mosaic_0001>
module attributes {stable_mosaic.version = 11 : i64} {
  func.func @_mlp_kernel(%arg0: i32, %arg1: memref<16x768xf32, #tpu.memory_space<vmem>>, %arg2: memref<768x128xbf16, #tpu.memory_space<vmem>>, %arg3: memref<1x128xf32, #tpu.memory_space<vmem>>, %arg4: memref<128x128xf32, #tpu.memory_space<vmem>>, %arg5: memref<1x128xf32, #tpu.memory_space<vmem>>, %arg6: memref<16x128xbf16, #tpu.memory_space<vmem>>) attributes {dimension_semantics = [#tpu.dimension_semantics<parallel>], iteration_bounds = array<i64: 1>, scalar_prefetch = 0 : i64, scratch_operands = 0 : i64, tpu.core_type = #tpu.core_type<tc>, window_params = [{transform_indices = @transform_0, window_bounds = array<i64: 16, 768>}, {pipeline_mode = #tpu.pipeline_mode<synchronous>, transform_indices = @transform_1, window_bounds = array<i64: 768, 128>}, {pipeline_mode = #tpu.pipeline_mode<synchronous>, transform_indices = @transform_2, window_bounds = array<i64: 1, 128>}, {pipeline_mode = #tpu.pipeline_mode<synchronous>, transform_indices = @transform_3, window_bounds = array<i64: 128, 128>}, {pipeline_mode = #tpu.pipeline_mode<synchronous>, transform_indices = @transform_4, window_bounds = array<i64: 1, 128>}, {transform_indices = @transform_5, window_bounds = array<i64: 16, 128>}]} {
    %c0 = arith.constant 0 : index
    %c0_0 = arith.constant 0 : index
    %0 = vector.load %arg1[%c0, %c0_0] : memref<16x768xf32, #tpu.memory_space<vmem>>, vector<16x768xf32>
    %1 = arith.truncf %0 : vector<16x768xf32> to vector<16x768xbf16>
    %c0_1 = arith.constant 0 : index
    %c0_2 = arith.constant 0 : index
    %2 = vector.load %arg2[%c0_1, %c0_2] : memref<768x128xbf16, #tpu.memory_space<vmem>>, vector<768x128xbf16>
    %cst = arith.constant dense<0.000000e+00> : vector<16x128xf32>
    %3 = tpu.matmul %1, %2, %cst {dimension_numbers = #tpu.dot_dimension_numbers<[1], [0], [0], [1], [0, 0, 1, 1], [], []>} : vector<16x768xbf16>, vector<768x128xbf16>, vector<16x128xf32> -> vector<16x128xf32>
    %c0_3 = arith.constant 0 : index
    %c0_4 = arith.constant 0 : index
    %4 = vector.load %arg3[%c0_3, %c0_4] : memref<1x128xf32, #tpu.memory_space<vmem>>, vector<1x128xf32>
    %5 = vector.broadcast %4 : vector<1x128xf32> to vector<16x128xf32>
    %6 = arith.addf %3, %5 : vector<16x128xf32>
    %cst_5 = arith.constant 0.000000e+00 : f32
    %7 = vector.broadcast %cst_5 : f32 to vector<16x128xf32>
    %8 = arith.maximumf %6, %7 : vector<16x128xf32>
    %c0_6 = arith.constant 0 : index
    %c0_7 = arith.constant 0 : index
    %9 = vector.load %arg4[%c0_6, %c0_7] : memref<128x128xf32, #tpu.memory_space<vmem>>, vector<128x128xf32>
    %cst_8 = arith.constant dense<0.000000e+00> : vector<16x128xf32>
    %10 = tpu.matmul %8, %9, %cst_8 {dimension_numbers = #tpu.dot_dimension_numbers<[1], [0], [0], [1], [0, 0, 1, 1], [], []>} : vector<16x128xf32>, vector<128x128xf32>, vector<16x128xf32> -> vector<16x128xf32>
    %c0_9 = arith.constant 0 : index
    %c0_10 = arith.constant 0 : index
    %11 = vector.load %arg5[%c0_9, %c0_10] : memref<1x128xf32, #tpu.memory_space<vmem>>, vector<1x128xf32>
    %12 = vector.broadcast %11 : vector<1x128xf32> to vector<16x128xf32>
    %13 = arith.addf %10, %12 : vector<16x128xf32>
    %14 = arith.truncf %13 : vector<16x128xf32> to vector<16x128xbf16>
    %c0_11 = arith.constant 0 : index
    %c0_12 = arith.constant 0 : index
    %15 = vector.load %arg6[%c0_11, %c0_12] : memref<16x128xbf16, #tpu.memory_space<vmem>>, vector<16x128xbf16>
    tpu.vector_store %arg6[%c0_11, %c0_12], %14 {strides = array<i32>} : memref<16x128xbf16, #tpu.memory_space<vmem>>, vector<16x128xbf16>,
    return
  }
  func.func @transform_0(%arg0: i32) -> (i32, i32) {
    %c0_i32 = arith.constant 0 : i32
    %c0_i32_0 = arith.constant 0 : i32
    return %arg0, %c0_i32 : i32, i32
  }
  func.func @transform_1(%arg0: i32) -> (i32, i32) {
    %c0_i32 = arith.constant 0 : i32
    %c0_i32_0 = arith.constant 0 : i32
    %c0_i32_1 = arith.constant 0 : i32
    return %c0_i32, %c0_i32_0 : i32, i32
  }
  func.func @transform_2(%arg0: i32) -> (i32, i32) {
    %c0_i32 = arith.constant 0 : i32
    %c0_i32_0 = arith.constant 0 : i32
    %c0_i32_1 = arith.constant 0 : i32
    return %c0_i32, %c0_i32_0 : i32, i32
  }
  func.func @transform_3(%arg0: i32) -> (i32, i32) {
    %c0_i32 = arith.constant 0 : i32
    %c0_i32_0 = arith.constant 0 : i32
    %c0_i32_1 = arith.constant 0 : i32
    return %c0_i32, %c0_i32_0 : i32, i32
  }
  func.func @transform_4(%arg0: i32) -> (i32, i32) {
    %c0_i32 = arith.constant 0 : i32
    %c0_i32_0 = arith.constant 0 : i32
    %c0_i32_1 = arith.constant 0 : i32
    return %c0_i32, %c0_i32_0 : i32, i32
  }
  func.func @transform_5(%arg0: i32) -> (i32, i32) {
    %c0_i32 = arith.constant 0 : i32
    %c0_i32_0 = arith.constant 0 : i32
    return %arg0, %c0_i32 : i32, i32
  }
}

</mosaic_0001>

<llo_original>
// kernel: tpu_custom_call.1
$region0: #{tpu_custom_call.1}
  #allocation0 [shape = 'u32[]', space=smem, size = 0x4, offset = 0x4, fixed_abs, tag = 'smem constant byte address 0x4 - core index']
  #allocation1 [shape = 'u32[144,128]{1,0:T(1,128)}', space=vmem, size = 0x12000, scoped, tag = 'internal scratch']
  %s0 = inlined_call_operand.hbm [shape: f32[16,768], index: 0, kind: input, shape index: {}]
  %s1 = inlined_call_operand.hbm [shape: bf16[768,128], index: 1, kind: input, shape index: {}]
  %s2 = inlined_call_operand.vmem [shape: f32[1,128], index: 2, kind: input, shape index: {}]
  %s3 = inlined_call_operand.hbm [shape: f32[128,128], index: 3, kind: input, shape index: {}]
  %s4 = inlined_call_operand.vmem [shape: f32[1,128], index: 4, kind: input, shape index: {}]
  %s5 = inlined_call_operand.hbm [shape: bf16[16,128], index: 5, kind: output, shape index: {}]
  %s6 = sld [smem:[#allocation0]]
  $region42: #{tpu_custom_call.1} parent=0
    _
  %s8 = ssub.s32 1, %s6
  %s9 = scalar_select 0, %s8, %s6
  $region1: #{tpu_custom_call.1} parent=0
    #allocation2 [shape = 'u8[49152]{0}', space=vmem, size = 0xc000, scoped, tag = 'input window, operand 0, single buffered']
    #allocation3 [shape = 's32[1]{0}', space=sflag, size = 0x4, scoped, tag = 'scoped memory for tpu_custom_call.1']
    #allocation4 [shape = 's32[1]{0}', space=sflag, size = 0x4, scoped, tag = 'scoped memory for tpu_custom_call.1']
    #allocation5 [shape = 'u8[196608]{0}', space=vmem, size = 0x30000, scoped, tag = 'input window, operand 1, single buffered']
    #allocation6 [shape = 's32[1]{0}', space=sflag, size = 0x4, scoped, tag = 'scoped memory for tpu_custom_call.1']
    #allocation7 [shape = 'u8[65536]{0}', space=vmem, size = 0x10000, scoped, tag = 'input window, operand 3, single buffered']
    #allocation8 [shape = 'u8[4096]{0}', space=vmem, size = 0x1000, scoped, tag = 'output window, operand 0, single buffered']
    %10 = vsyncpa [#allocation3], 0
    %11 = vsyncpa [#allocation6], 0
    %12 = vsyncpa [#allocation4], 0
    // Predicated region
    $region2: #{tpu_custom_call.1} parent=1 // pred_check
      _
    $region3: #{tpu_custom_call.1} parent=1 // pred_check_branch
      %14 = sbr.rel (0) target = $region5
    $region4: #{tpu_custom_call.1} parent=1 // pred_region
      %s16 = ssub.s32 1536, 1536
      %17 = vsyncadd [#allocation3], %s16
      %s18 = sshll.u32 [#allocation2], 4
      %s19 = int_to_ptr.vmem [resolvable:$true] %s18
      %24 = dma.hbm_to_vmem [thread:$0]  %s0, 1536, %s19, [#allocation3], 768, 768, 48
    $region5: #{tpu_custom_call.1} parent=1 // pred_fallthru
      _
    // Predicated region
    $region6: #{tpu_custom_call.1} parent=1 // pred_check
      _
    $region7: #{tpu_custom_call.1} parent=1 // pred_check_branch
      %26 = sbr.rel (0) target = $region9
    $region8: #{tpu_custom_call.1} parent=1 // pred_region
      %s28 = ssub.s32 6144, 6144
      %29 = vsyncadd [#allocation6], %s28
      %s30 = sshll.u32 [#allocation5], 4
      %s31 = int_to_ptr.vmem [resolvable:$true] %s30
      %36 = dma.hbm_to_vmem [thread:$0]  %s1, 6144, %s31, [#allocation6], 64, 64, 4
    $region9: #{tpu_custom_call.1} parent=1 // pred_fallthru
      _
    // Predicated region
    $region10: #{tpu_custom_call.1} parent=1 // pred_check
      _
    $region11: #{tpu_custom_call.1} parent=1 // pred_check_branch
      %38 = sbr.rel (0) target = $region13
    $region12: #{tpu_custom_call.1} parent=1 // pred_region
      _
    $region13: #{tpu_custom_call.1} parent=1 // pred_fallthru
      _
    // Predicated region
    $region14: #{tpu_custom_call.1} parent=1 // pred_check
      _
    $region15: #{tpu_custom_call.1} parent=1 // pred_check_branch
      %40 = sbr.rel (0) target = $region17
    $region16: #{tpu_custom_call.1} parent=1 // pred_region
      %s42 = ssub.s32 2048, 2048
      %43 = vsyncadd [#allocation6], %s42
      %s44 = sshll.u32 [#allocation7], 4
      %s45 = int_to_ptr.vmem [resolvable:$true] %s44
      %50 = dma.hbm_to_vmem [thread:$0]  %s3, 2048, %s45, [#allocation6], 128, 128, 8
    $region17: #{tpu_custom_call.1} parent=1 // pred_fallthru
      _
    // Predicated region
    $region18: #{tpu_custom_call.1} parent=1 // pred_check
      _
    $region19: #{tpu_custom_call.1} parent=1 // pred_check_branch
      %52 = sbr.rel (0) target = $region21
    $region20: #{tpu_custom_call.1} parent=1 // pred_region
      _
    $region21: #{tpu_custom_call.1} parent=1 // pred_fallthru
      _
    // Predicated region
    $region22: #{tpu_custom_call.1} parent=1 // pred_check
      _
    $region23: #{tpu_custom_call.1} parent=1 // pred_check_branch
      %54 = sbr.rel (0) target = $region25
    $region24: #{tpu_custom_call.1} parent=1 // pred_region
      %55 = dma.done [#allocation3], 1536
    $region25: #{tpu_custom_call.1} parent=1 // pred_fallthru
      _
    // Predicated region
    $region26: #{tpu_custom_call.1} parent=1 // pred_check
      _
    $region27: #{tpu_custom_call.1} parent=1 // pred_check_branch
      %57 = sbr.rel (0) target = $region29
    $region28: #{tpu_custom_call.1} parent=1 // pred_region
      %58 = dma.done [#allocation6], 6144
    $region29: #{tpu_custom_call.1} parent=1 // pred_fallthru
      _
    // Predicated region
    $region30: #{tpu_custom_call.1} parent=1 // pred_check
      _
    $region31: #{tpu_custom_call.1} parent=1 // pred_check_branch
      %60 = sbr.rel (0) target = $region33
    $region32: #{tpu_custom_call.1} parent=1 // pred_region
      %61 = dma.done [#allocation6], 2048
    $region33: #{tpu_custom_call.1} parent=1 // pred_fallthru
      _
    %v63 = vld [vmem:[#allocation2] sm:$0xff]
    %v64 = vld [vmem:[#allocation2 + $0x8] sm:$0xff]
    %v65 = vld [vmem:[#allocation2 + $0x10] sm:$0xff]
    %v66 = vld [vmem:[#allocation2 + $0x18] sm:$0xff]
    %v67 = vld [vmem:[#allocation2 + $0x20] sm:$0xff]
    %v68 = vld [vmem:[#allocation2 + $0x28] sm:$0xff]
    %v69 = vld [vmem:[#allocation2 + $0x30] sm:$0xff]
    %v70 = vld [vmem:[#allocation2 + $0x38] sm:$0xff]
    %v71 = vld [vmem:[#allocation2 + $0x40] sm:$0xff]
    %v72 = vld [vmem:[#allocation2 + $0x48] sm:$0xff]
    %v73 = vld [vmem:[#allocation2 + $0x50] sm:$0xff]
    %v74 = vld [vmem:[#allocation2 + $0x58] sm:$0xff]
    %v75 = vpack.c.bf16 %v69, %v63
    %v76 = vpack.c.bf16 %v70, %v64
    %v77 = vpack.c.bf16 %v71, %v65
    %v78 = vpack.c.bf16 %v72, %v66
    %v79 = vpack.c.bf16 %v73, %v67
    %v80 = vpack.c.bf16 %v74, %v68
    %v81 = vld [vmem:[#allocation5] sm:$0xf]
    %v82 = vld [vmem:[#allocation5 + $0x4] sm:$0xf]
    %v83 = vld [vmem:[#allocation5 + $0x8] sm:$0xf]
    %v84 = vld [vmem:[#allocation5 + $0xc] sm:$0xf]
    %v85 = vld [vmem:[#allocation5 + $0x10] sm:$0xf]
    %v86 = vld [vmem:[#allocation5 + $0x14] sm:$0xf]
    %v87 = vld [vmem:[#allocation5 + $0x18] sm:$0xf]
    %v88 = vld [vmem:[#allocation5 + $0x1c] sm:$0xf]
    %v89 = vld [vmem:[#allocation5 + $0x20] sm:$0xf]
    %v90 = vld [vmem:[#allocation5 + $0x24] sm:$0xf]
    %v91 = vld [vmem:[#allocation5 + $0x28] sm:$0xf]
    %v92 = vld [vmem:[#allocation5 + $0x2c] sm:$0xf]
    %v93 = vld [vmem:[#allocation5 + $0x30] sm:$0xf]
    %v94 = vld [vmem:[#allocation5 + $0x34] sm:$0xf]
    %v95 = vld [vmem:[#allocation5 + $0x38] sm:$0xf]
    %v96 = vld [vmem:[#allocation5 + $0x3c] sm:$0xf]
    %v97 = vld [vmem:[#allocation5 + $0x40] sm:$0xf]
    %v98 = vld [vmem:[#allocation5 + $0x44] sm:$0xf]
    %v99 = vld [vmem:[#allocation5 + $0x48] sm:$0xf]
    %v100 = vld [vmem:[#allocation5 + $0x4c] sm:$0xf]
    %v101 = vld [vmem:[#allocation5 + $0x50] sm:$0xf]
    %v102 = vld [vmem:[#allocation5 + $0x54] sm:$0xf]
    %v103 = vld [vmem:[#allocation5 + $0x58] sm:$0xf]
    %v104 = vld [vmem:[#allocation5 + $0x5c] sm:$0xf]
    %v105 = vld [vmem:[#allocation5 + $0x60] sm:$0xf]
    %v106 = vld [vmem:[#allocation5 + $0x64] sm:$0xf]
    %v107 = vld [vmem:[#allocation5 + $0x68] sm:$0xf]
    %v108 = vld [vmem:[#allocation5 + $0x6c] sm:$0xf]
    %v109 = vld [vmem:[#allocation5 + $0x70] sm:$0xf]
    %v110 = vld [vmem:[#allocation5 + $0x74] sm:$0xf]
    %v111 = vld [vmem:[#allocation5 + $0x78] sm:$0xf]
    %v112 = vld [vmem:[#allocation5 + $0x7c] sm:$0xf]
    %v113 = vld [vmem:[#allocation5 + $0x80] sm:$0xf]
    %v114 = vld [vmem:[#allocation5 + $0x84] sm:$0xf]
    %v115 = vld [vmem:[#allocation5 + $0x88] sm:$0xf]
    %v116 = vld [vmem:[#allocation5 + $0x8c] sm:$0xf]
    %v117 = vld [vmem:[#allocation5 + $0x90] sm:$0xf]
    %v118 = vld [vmem:[#allocation5 + $0x94] sm:$0xf]
    %v119 = vld [vmem:[#allocation5 + $0x98] sm:$0xf]
    %v120 = vld [vmem:[#allocation5 + $0x9c] sm:$0xf]
    %v121 = vld [vmem:[#allocation5 + $0xa0] sm:$0xf]
    %v122 = vld [vmem:[#allocation5 + $0xa4] sm:$0xf]
    %v123 = vld [vmem:[#allocation5 + $0xa8] sm:$0xf]
    %v124 = vld [vmem:[#allocation5 + $0xac] sm:$0xf]
    %v125 = vld [vmem:[#allocation5 + $0xb0] sm:$0xf]
    %v126 = vld [vmem:[#allocation5 + $0xb4] sm:$0xf]
    %v127 = vld [vmem:[#allocation5 + $0xb8] sm:$0xf]
    %v128 = vld [vmem:[#allocation5 + $0xbc] sm:$0xf]
    %v129 = vld [vmem:[#allocation5 + $0xc0] sm:$0xf]
    %v130 = vld [vmem:[#allocation5 + $0xc4] sm:$0xf]
    %v131 = vld [vmem:[#allocation5 + $0xc8] sm:$0xf]
    %v132 = vld [vmem:[#allocation5 + $0xcc] sm:$0xf]
    %v133 = vld [vmem:[#allocation5 + $0xd0] sm:$0xf]
    %v134 = vld [vmem:[#allocation5 + $0xd4] sm:$0xf]
    %v135 = vld [vmem:[#allocation5 + $0xd8] sm:$0xf]
    %v136 = vld [vmem:[#allocation5 + $0xdc] sm:$0xf]
    %v137 = vld [vmem:[#allocation5 + $0xe0] sm:$0xf]
    %v138 = vld [vmem:[#allocation5 + $0xe4] sm:$0xf]
    %v139 = vld [vmem:[#allocation5 + $0xe8] sm:$0xf]
    %v140 = vld [vmem:[#allocation5 + $0xec] sm:$0xf]
    %v141 = vld [vmem:[#allocation5 + $0xf0] sm:$0xf]
    %v142 = vld [vmem:[#allocation5 + $0xf4] sm:$0xf]
    %v143 = vld [vmem:[#allocation5 + $0xf8] sm:$0xf]
    %v144 = vld [vmem:[#allocation5 + $0xfc] sm:$0xf]
    %v145 = vld [vmem:[#allocation5 + $0x100] sm:$0xf]
    %v146 = vld [vmem:[#allocation5 + $0x104] sm:$0xf]
    %v147 = vld [vmem:[#allocation5 + $0x108] sm:$0xf]
    %v148 = vld [vmem:[#allocation5 + $0x10c] sm:$0xf]
    %v149 = vld [vmem:[#allocation5 + $0x110] sm:$0xf]
    %v150 = vld [vmem:[#allocation5 + $0x114] sm:$0xf]
    %v151 = vld [vmem:[#allocation5 + $0x118] sm:$0xf]
    %v152 = vld [vmem:[#allocation5 + $0x11c] sm:$0xf]
    %v153 = vld [vmem:[#allocation5 + $0x120] sm:$0xf]
    %v154 = vld [vmem:[#allocation5 + $0x124] sm:$0xf]
    %v155 = vld [vmem:[#allocation5 + $0x128] sm:$0xf]
    %v156 = vld [vmem:[#allocation5 + $0x12c] sm:$0xf]
    %v157 = vld [vmem:[#allocation5 + $0x130] sm:$0xf]
    %v158 = vld [vmem:[#allocation5 + $0x134] sm:$0xf]
    %v159 = vld [vmem:[#allocation5 + $0x138] sm:$0xf]
    %v160 = vld [vmem:[#allocation5 + $0x13c] sm:$0xf]
    %v161 = vld [vmem:[#allocation5 + $0x140] sm:$0xf]
    %v162 = vld [vmem:[#allocation5 + $0x144] sm:$0xf]
    %v163 = vld [vmem:[#allocation5 + $0x148] sm:$0xf]
    %v164 = vld [vmem:[#allocation5 + $0x14c] sm:$0xf]
    %v165 = vld [vmem:[#allocation5 + $0x150] sm:$0xf]
    %v166 = vld [vmem:[#allocation5 + $0x154] sm:$0xf]
    %v167 = vld [vmem:[#allocation5 + $0x158] sm:$0xf]
    %v168 = vld [vmem:[#allocation5 + $0x15c] sm:$0xf]
    %v169 = vld [vmem:[#allocation5 + $0x160] sm:$0xf]
    %v170 = vld [vmem:[#allocation5 + $0x164] sm:$0xf]
    %v171 = vld [vmem:[#allocation5 + $0x168] sm:$0xf]
    %v172 = vld [vmem:[#allocation5 + $0x16c] sm:$0xf]
    %v173 = vld [vmem:[#allocation5 + $0x170] sm:$0xf]
    %v174 = vld [vmem:[#allocation5 + $0x174] sm:$0xf]
    %v175 = vld [vmem:[#allocation5 + $0x178] sm:$0xf]
    %v176 = vld [vmem:[#allocation5 + $0x17c] sm:$0xf]
    %v177 = vld [vmem:[%s2] sm:$0x1]
    %v179 = vlaneseq
    %v180 = vshrl.u32 %v179, 7
    %v181 = vsub.s32 0, %v180
    %v182 = vrot.slane %v177, %v181
    %v280 = vunpack.c.l.b16 %v81
    %v281 = vunpack.c.l.b16 %v82
    %v282 = vunpack.c.l.b16 %v83
    %v283 = vunpack.c.l.b16 %v84
    %v284 = vunpack.c.l.b16 %v85
    %v285 = vunpack.c.l.b16 %v86
    %v286 = vunpack.c.l.b16 %v87
    %v287 = vunpack.c.l.b16 %v88
    %v288 = vunpack.c.l.b16 %v89
    %v289 = vunpack.c.l.b16 %v90
    %v290 = vunpack.c.l.b16 %v91
    %v291 = vunpack.c.l.b16 %v92
    %v292 = vunpack.c.l.b16 %v93
    %v293 = vunpack.c.l.b16 %v94
    %v294 = vunpack.c.l.b16 %v95
    %v295 = vunpack.c.l.b16 %v96
    %v296 = vunpack.c.l.b16 %v97
    %v297 = vunpack.c.l.b16 %v98
    %v298 = vunpack.c.l.b16 %v99
    %v299 = vunpack.c.l.b16 %v100
    %v300 = vunpack.c.l.b16 %v101
    %v301 = vunpack.c.l.b16 %v102
    %v302 = vunpack.c.l.b16 %v103
    %v303 = vunpack.c.l.b16 %v104
    %v304 = vunpack.c.l.b16 %v105
    %v305 = vunpack.c.l.b16 %v106
    %v306 = vunpack.c.l.b16 %v107
    %v307 = vunpack.c.l.b16 %v108
    %v308 = vunpack.c.l.b16 %v109
    %v309 = vunpack.c.l.b16 %v110
    %v310 = vunpack.c.l.b16 %v111
    %v311 = vunpack.c.l.b16 %v112
    %v312 = vunpack.c.l.b16 %v113
    %v313 = vunpack.c.l.b16 %v114
    %v314 = vunpack.c.l.b16 %v115
    %v315 = vunpack.c.l.b16 %v116
    %v316 = vunpack.c.l.b16 %v117
    %v317 = vunpack.c.l.b16 %v118
    %v318 = vunpack.c.l.b16 %v119
    %v319 = vunpack.c.l.b16 %v120
    %v320 = vunpack.c.l.b16 %v121
    %v321 = vunpack.c.l.b16 %v122
    %v322 = vunpack.c.l.b16 %v123
    %v323 = vunpack.c.l.b16 %v124
    %v324 = vunpack.c.l.b16 %v125
    %v325 = vunpack.c.l.b16 %v126
    %v326 = vunpack.c.l.b16 %v127
    %v327 = vunpack.c.l.b16 %v128
    %v328 = vunpack.c.l.b16 %v129
    %v329 = vunpack.c.l.b16 %v130
    %v330 = vunpack.c.l.b16 %v131
    %v331 = vunpack.c.l.b16 %v132
    %v332 = vunpack.c.l.b16 %v133
    %v333 = vunpack.c.l.b16 %v134
    %v334 = vunpack.c.l.b16 %v135
    %v335 = vunpack.c.l.b16 %v136
    %v336 = vunpack.c.l.b16 %v137
    %v337 = vunpack.c.l.b16 %v138
    %v338 = vunpack.c.l.b16 %v139
    %v339 = vunpack.c.l.b16 %v140
    %v340 = vunpack.c.l.b16 %v141
    %v341 = vunpack.c.l.b16 %v142
    %v342 = vunpack.c.l.b16 %v143
    %v343 = vunpack.c.l.b16 %v144
    %v344 = vunpack.c.l.b16 %v145
    %v345 = vunpack.c.l.b16 %v146
    %v346 = vunpack.c.l.b16 %v147
    %v347 = vunpack.c.l.b16 %v148
    %v348 = vunpack.c.l.b16 %v149
    %v349 = vunpack.c.l.b16 %v150
    %v350 = vunpack.c.l.b16 %v151
    %v351 = vunpack.c.l.b16 %v152
    %v352 = vunpack.c.l.b16 %v153
    %v353 = vunpack.c.l.b16 %v154
    %v354 = vunpack.c.l.b16 %v155
    %v355 = vunpack.c.l.b16 %v156
    %v356 = vunpack.c.l.b16 %v157
    %v357 = vunpack.c.l.b16 %v158
    %v358 = vunpack.c.l.b16 %v159
    %v359 = vunpack.c.l.b16 %v160
    %v360 = vunpack.c.l.b16 %v161
    %v361 = vunpack.c.l.b16 %v162
    %v362 = vunpack.c.l.b16 %v163
    %v363 = vunpack.c.l.b16 %v164
    %v364 = vunpack.c.l.b16 %v165
    %v365 = vunpack.c.l.b16 %v166
    %v366 = vunpack.c.l.b16 %v167
    %v367 = vunpack.c.l.b16 %v168
    %v368 = vunpack.c.l.b16 %v169
    %v369 = vunpack.c.l.b16 %v170
    %v370 = vunpack.c.l.b16 %v171
    %v371 = vunpack.c.l.b16 %v172
    %v372 = vunpack.c.l.b16 %v173
    %v373 = vunpack.c.l.b16 %v174
    %v374 = vunpack.c.l.b16 %v175
    %v375 = vunpack.c.l.b16 %v176
    %v376 = vpack.c.b16 %v281, %v280
    %v377 = vpack.c.b16 %v283, %v282
    %v378 = vpack.c.b16 %v285, %v284
    %v379 = vpack.c.b16 %v287, %v286
    %v380 = vpack.c.b16 %v289, %v288
    %v381 = vpack.c.b16 %v291, %v290
    %v382 = vpack.c.b16 %v293, %v292
    %v383 = vpack.c.b16 %v295, %v294
    %v384 = vpack.c.b16 %v297, %v296
    %v385 = vpack.c.b16 %v299, %v298
    %v386 = vpack.c.b16 %v301, %v300
    %v387 = vpack.c.b16 %v303, %v302
    %v388 = vpack.c.b16 %v305, %v304
    %v389 = vpack.c.b16 %v307, %v306
    %v390 = vpack.c.b16 %v309, %v308
    %v391 = vpack.c.b16 %v311, %v310
    %v392 = vpack.c.b16 %v313, %v312
    %v393 = vpack.c.b16 %v315, %v314
    %v394 = vpack.c.b16 %v317, %v316
    %v395 = vpack.c.b16 %v319, %v318
    %v396 = vpack.c.b16 %v321, %v320
    %v397 = vpack.c.b16 %v323, %v322
    %v398 = vpack.c.b16 %v325, %v324
    %v399 = vpack.c.b16 %v327, %v326
    %v400 = vpack.c.b16 %v329, %v328
    %v401 = vpack.c.b16 %v331, %v330
    %v402 = vpack.c.b16 %v333, %v332
    %v403 = vpack.c.b16 %v335, %v334
    %v404 = vpack.c.b16 %v337, %v336
    %v405 = vpack.c.b16 %v339, %v338
    %v406 = vpack.c.b16 %v341, %v340
    %v407 = vpack.c.b16 %v343, %v342
    %v408 = vpack.c.b16 %v345, %v344
    %v409 = vpack.c.b16 %v347, %v346
    %v410 = vpack.c.b16 %v349, %v348
    %v411 = vpack.c.b16 %v351, %v350
    %v412 = vpack.c.b16 %v353, %v352
    %v413 = vpack.c.b16 %v355, %v354
    %v414 = vpack.c.b16 %v357, %v356
    %v415 = vpack.c.b16 %v359, %v358
    %v416 = vpack.c.b16 %v361, %v360
    %v417 = vpack.c.b16 %v363, %v362
    %v418 = vpack.c.b16 %v365, %v364
    %v419 = vpack.c.b16 %v367, %v366
    %v420 = vpack.c.b16 %v369, %v368
    %v421 = vpack.c.b16 %v371, %v370
    %v422 = vpack.c.b16 %v373, %v372
    %v423 = vpack.c.b16 %v375, %v374
    %472 = vmatprep.subr.bf16.mxu0 0
    %473 = vmatpush1.bf16.msra.mxu0 %v376
    %474 = vmatprep.subr.bf16.mxu0 0
    %475 = vmatpush1.bf16.msra.mxu0 %v377
    %476 = vmatprep.subr.bf16.mxu0 0
    %477 = vmatpush1.bf16.msra.mxu0 %v378
    %478 = vmatprep.subr.bf16.mxu0 0
    %479 = vmatpush1.bf16.msra.mxu0 %v379
    %480 = vmatprep.subr.bf16.mxu0 0
    %481 = vmatpush1.bf16.msra.mxu0 %v380
    %482 = vmatprep.subr.bf16.mxu0 0
    %483 = vmatpush1.bf16.msra.mxu0 %v381
    %484 = vmatprep.subr.bf16.mxu0 0
    %485 = vmatpush1.bf16.msra.mxu0 %v382
    %486 = vmatprep.subr.bf16.mxu0 0
    %487 = vmatpush1.bf16.msra.mxu0 %v383
    %488 = vmatprep.subr.bf16.mxu0 0
    %489 = vmatpush1.bf16.msra.mxu0 %v384
    %490 = vmatprep.subr.bf16.mxu0 0
    %491 = vmatpush1.bf16.msra.mxu0 %v385
    %492 = vmatprep.subr.bf16.mxu0 0
    %493 = vmatpush1.bf16.msra.mxu0 %v386
    %494 = vmatprep.subr.bf16.mxu0 0
    %495 = vmatpush1.bf16.msra.mxu0 %v387
    %496 = vmatprep.subr.bf16.mxu0 0
    %497 = vmatpush1.bf16.msra.mxu0 %v388
    %498 = vmatprep.subr.bf16.mxu0 0
    %499 = vmatpush1.bf16.msra.mxu0 %v389
    %500 = vmatprep.subr.bf16.mxu0 0
    %501 = vmatpush1.bf16.msra.mxu0 %v390
    %502 = vmatprep.subr.bf16.mxu0 0
    %503 = vmatpush1.bf16.msra.mxu0 %v391
    %504 = vmatprep.mubr.bf16.mxu0 %v76
    %505 = vmatmul.mubr.bf16.gmra.mrb[0].mxu0 %v75
    %v506 = vpop.f32.mrb[0].mxu0
    %v507 = vadd.f32 %v182, %v506
    %v508 = vpop.f32.mrb[0].mxu0
    %v509 = vpop.f32.mrb[0].mxu0
    %v510 = vadd.f32 %v182, %v509
    %v511 = vpop.f32.mrb[0].mxu0
    %512 = vdwg.mxu0
    %513 = vmatprep.subr.bf16.mxu0 0
    %514 = vmatpush1.bf16.msra.mxu0 %v392
    %515 = vmatprep.subr.bf16.mxu0 0
    %516 = vmatpush1.bf16.msra.mxu0 %v393
    %517 = vmatprep.subr.bf16.mxu0 0
    %518 = vmatpush1.bf16.msra.mxu0 %v394
    %519 = vmatprep.subr.bf16.mxu0 0
    %520 = vmatpush1.bf16.msra.mxu0 %v395
    %521 = vmatprep.subr.bf16.mxu0 0
    %522 = vmatpush1.bf16.msra.mxu0 %v396
    %523 = vmatprep.subr.bf16.mxu0 0
    %524 = vmatpush1.bf16.msra.mxu0 %v397
    %525 = vmatprep.subr.bf16.mxu0 0
    %526 = vmatpush1.bf16.msra.mxu0 %v398
    %527 = vmatprep.subr.bf16.mxu0 0
    %528 = vmatpush1.bf16.msra.mxu0 %v399
    %529 = vmatprep.subr.bf16.mxu0 0
    %530 = vmatpush1.bf16.msra.mxu0 %v400
    %531 = vmatprep.subr.bf16.mxu0 0
    %532 = vmatpush1.bf16.msra.mxu0 %v401
    %533 = vmatprep.subr.bf16.mxu0 0
    %534 = vmatpush1.bf16.msra.mxu0 %v402
    %535 = vmatprep.subr.bf16.mxu0 0
    %536 = vmatpush1.bf16.msra.mxu0 %v403
    %537 = vmatprep.subr.bf16.mxu0 0
    %538 = vmatpush1.bf16.msra.mxu0 %v404
    %539 = vmatprep.subr.bf16.mxu0 0
    %540 = vmatpush1.bf16.msra.mxu0 %v405
    %541 = vmatprep.subr.bf16.mxu0 0
    %542 = vmatpush1.bf16.msra.mxu0 %v406
    %543 = vmatprep.subr.bf16.mxu0 0
    %544 = vmatpush1.bf16.msra.mxu0 %v407
    %545 = vmatprep.mubr.bf16.mxu0 %v78
    %546 = vmatmul.mubr.bf16.gmra.mrb[0].mxu0 %v77
    %v547 = vpop.f32.mrb[0].mxu0
    %v548 = vadd.f32 %v507, %v547
    %v549 = vpop.f32.mrb[0].mxu0
    %v550 = vpop.f32.mrb[0].mxu0
    %v551 = vadd.f32 %v510, %v550
    %v552 = vpop.f32.mrb[0].mxu0
    %553 = vdwg.mxu0
    %554 = vmatprep.subr.bf16.mxu0 0
    %555 = vmatpush1.bf16.msra.mxu0 %v408
    %556 = vmatprep.subr.bf16.mxu0 0
    %557 = vmatpush1.bf16.msra.mxu0 %v409
    %558 = vmatprep.subr.bf16.mxu0 0
    %559 = vmatpush1.bf16.msra.mxu0 %v410
    %560 = vmatprep.subr.bf16.mxu0 0
    %561 = vmatpush1.bf16.msra.mxu0 %v411
    %562 = vmatprep.subr.bf16.mxu0 0
    %563 = vmatpush1.bf16.msra.mxu0 %v412
    %564 = vmatprep.subr.bf16.mxu0 0
    %565 = vmatpush1.bf16.msra.mxu0 %v413
    %566 = vmatprep.subr.bf16.mxu0 0
    %567 = vmatpush1.bf16.msra.mxu0 %v414
    %568 = vmatprep.subr.bf16.mxu0 0
    %569 = vmatpush1.bf16.msra.mxu0 %v415
    %570 = vmatprep.subr.bf16.mxu0 0
    %571 = vmatpush1.bf16.msra.mxu0 %v416
    %572 = vmatprep.subr.bf16.mxu0 0
    %573 = vmatpush1.bf16.msra.mxu0 %v417
    %574 = vmatprep.subr.bf16.mxu0 0
    %575 = vmatpush1.bf16.msra.mxu0 %v418
    %576 = vmatprep.subr.bf16.mxu0 0
    %577 = vmatpush1.bf16.msra.mxu0 %v419
    %578 = vmatprep.subr.bf16.mxu0 0
    %579 = vmatpush1.bf16.msra.mxu0 %v420
    %580 = vmatprep.subr.bf16.mxu0 0
    %581 = vmatpush1.bf16.msra.mxu0 %v421
    %582 = vmatprep.subr.bf16.mxu0 0
    %583 = vmatpush1.bf16.msra.mxu0 %v422
    %584 = vmatprep.subr.bf16.mxu0 0
    %585 = vmatpush1.bf16.msra.mxu0 %v423
    %586 = vmatprep.mubr.bf16.mxu0 %v80
    %587 = vmatmul.mubr.bf16.gmra.mrb[0].mxu0 %v79
    %v588 = vpop.f32.mrb[0].mxu0
    %v589 = vadd.f32 %v548, %v588
    %v590 = vpop.f32.mrb[0].mxu0
    %v591 = vpop.f32.mrb[0].mxu0
    %v592 = vadd.f32 %v551, %v591
    %v593 = vpop.f32.mrb[0].mxu0
    %594 = vdwg.mxu0
    %v595 = vmax.f32 %v589, 0.0
    %v596 = vmax.f32 %v592, 0.0
    %v597 = vld [vmem:[#allocation7] sm:$0xff]
    %v598 = vld [vmem:[#allocation7 + $0x8] sm:$0xff]
    %v599 = vld [vmem:[#allocation7 + $0x10] sm:$0xff]
    %v600 = vld [vmem:[#allocation7 + $0x18] sm:$0xff]
    %v601 = vld [vmem:[#allocation7 + $0x20] sm:$0xff]
    %v602 = vld [vmem:[#allocation7 + $0x28] sm:$0xff]
    %v603 = vld [vmem:[#allocation7 + $0x30] sm:$0xff]
    %v604 = vld [vmem:[#allocation7 + $0x38] sm:$0xff]
    %v605 = vld [vmem:[#allocation7 + $0x40] sm:$0xff]
    %v606 = vld [vmem:[#allocation7 + $0x48] sm:$0xff]
    %v607 = vld [vmem:[#allocation7 + $0x50] sm:$0xff]
    %v608 = vld [vmem:[#allocation7 + $0x58] sm:$0xff]
    %v609 = vld [vmem:[#allocation7 + $0x60] sm:$0xff]
    %v610 = vld [vmem:[#allocation7 + $0x68] sm:$0xff]
    %v611 = vld [vmem:[#allocation7 + $0x70] sm:$0xff]
    %v612 = vld [vmem:[#allocation7 + $0x78] sm:$0xff]
    %v613 = vld [vmem:[%s4] sm:$0x1]
    %v615 = vlaneseq
    %v616 = vshrl.u32 %v615, 7
    %v617 = vsub.s32 0, %v616
    %v618 = vrot.slane %v613, %v617
    %620 = vmatprep.subr.mxu0 0.0
    %621 = vmatpush1.msra.mxu0 %v597
    %622 = vmatprep.subr.mxu0 0.0
    %623 = vmatpush1.msra.mxu0 %v598
    %624 = vmatprep.subr.mxu0 0.0
    %625 = vmatpush1.msra.mxu0 %v599
    %626 = vmatprep.subr.mxu0 0.0
    %627 = vmatpush1.msra.mxu0 %v600
    %628 = vmatprep.subr.mxu0 0.0
    %629 = vmatpush1.msra.mxu0 %v601
    %630 = vmatprep.subr.mxu0 0.0
    %631 = vmatpush1.msra.mxu0 %v602
    %632 = vmatprep.subr.mxu0 0.0
    %633 = vmatpush1.msra.mxu0 %v603
    %634 = vmatprep.subr.mxu0 0.0
    %635 = vmatpush1.msra.mxu0 %v604
    %636 = vmatprep.subr.mxu0 0.0
    %637 = vmatpush1.msra.mxu0 %v605
    %638 = vmatprep.subr.mxu0 0.0
    %639 = vmatpush1.msra.mxu0 %v606
    %640 = vmatprep.subr.mxu0 0.0
    %641 = vmatpush1.msra.mxu0 %v607
    %642 = vmatprep.subr.mxu0 0.0
    %643 = vmatpush1.msra.mxu0 %v608
    %644 = vmatprep.subr.mxu0 0.0
    %645 = vmatpush1.msra.mxu0 %v609
    %646 = vmatprep.subr.mxu0 0.0
    %647 = vmatpush1.msra.mxu0 %v610
    %648 = vmatprep.subr.mxu0 0.0
    %649 = vmatpush1.msra.mxu0 %v611
    %650 = vmatprep.subr.mxu0 0.0
    %651 = vmatpush1.msra.mxu0 %v612
    %652 = vmatprep.subr.mxu0 0.0
    %653 = vmatpush1.msra.mxu0 0.0
    %654 = vmatprep.subr.mxu0 0.0
    %655 = vmatpush1.msra.mxu0 0.0
    %656 = vmatprep.subr.mxu0 0.0
    %657 = vmatpush1.msra.mxu0 0.0
    %658 = vmatprep.subr.mxu0 0.0
    %659 = vmatpush1.msra.mxu0 0.0
    %660 = vmatprep.subr.mxu0 0.0
    %661 = vmatpush1.msra.mxu0 0.0
    %662 = vmatprep.subr.mxu0 0.0
    %663 = vmatpush1.msra.mxu0 0.0
    %664 = vmatprep.subr.mxu0 0.0
    %665 = vmatpush1.msra.mxu0 0.0
    %666 = vmatprep.subr.mxu0 0.0
    %667 = vmatpush1.msra.mxu0 0.0
    %668 = vmatprep.subr.mxu0 0.0
    %669 = vmatpush1.msra.mxu0 0.0
    %670 = vmatprep.subr.mxu0 0.0
    %671 = vmatpush1.msra.mxu0 0.0
    %672 = vmatprep.subr.mxu0 0.0
    %673 = vmatpush1.msra.mxu0 0.0
    %674 = vmatprep.subr.mxu0 0.0
    %675 = vmatpush1.msra.mxu0 0.0
    %676 = vmatprep.subr.mxu0 0.0
    %677 = vmatpush1.msra.mxu0 0.0
    %678 = vmatprep.subr.mxu0 0.0
    %679 = vmatpush1.msra.mxu0 0.0
    %680 = vmatprep.subr.mxu0 0.0
    %681 = vmatpush1.msra.mxu0 0.0
    %682 = vmatprep.subr.mxu0 0.0
    %683 = vmatpush1.msra.mxu0 0.0
    %684 = vmatprep.mubr.f32.mxu0 0.0
    %685 = vmatmul.mubr.f32.gmra.mrb[0].mxu0 %v595
    %v686 = vpop.f32.mrb[0].mxu0
    %v687 = vadd.f32 %v618, %v686
    %v688 = vpop.f32.mrb[0].mxu0
    %689 = vmatprep.mubr.f32.mxu0 0.0
    %690 = vmatmul.mubr.f32.gmra.mrb[0].mxu0 %v596
    %v691 = vpop.f32.mrb[0].mxu0
    %v692 = vadd.f32 %v618, %v691
    %v693 = vpop.f32.mrb[0].mxu0
    %694 = vdwg.mxu0
    %v695 = vpack.c.bf16 %v692, %v687
    %v697 = vunpack.c.l.b16 %v695
    %v698 = vunpack.c.h.b16 %v695
    %v699 = vpack.c.b16 %v697, %v697
    %v700 = vpack.c.b16 %v698, %v698
    %703 = vst [vmem:[#allocation8] sm:$0xf] %v699
    %704 = vst [vmem:[#allocation8 + $0x4] sm:$0xf] %v700
    // Predicated region
    $region34: #{tpu_custom_call.1} parent=1 // pred_check
      _
    $region35: #{tpu_custom_call.1} parent=1 // pred_check_branch
      %706 = sbr.rel (0) target = $region37
    $region36: #{tpu_custom_call.1} parent=1 // pred_region
      %s708 = ssub.s32 128, 128
      %709 = vsyncadd [#allocation4], %s708
      %s710 = sshll.u32 [#allocation8], 4
      %s711 = int_to_ptr.vmem [resolvable:$true] %s710
      %716 = dma.vmem_to_hbm [thread:$0]  %s711, 128, %s5, [#allocation4], 64, 64, 4
    $region37: #{tpu_custom_call.1} parent=1 // pred_fallthru
      _
    // Predicated region
    $region38: #{tpu_custom_call.1} parent=1 // pred_check
      _
    $region39: #{tpu_custom_call.1} parent=1 // pred_check_branch
      %718 = sbr.rel (0) target = $region41
    $region40: #{tpu_custom_call.1} parent=1 // pred_region
      %719 = dma.done [#allocation4], 128
    $region41: #{tpu_custom_call.1} parent=1 // pred_fallthru
      _
    %720 = vsyncpa [#allocation3], 1
    %721 = vsyncpa [#allocation6], 1
    %722 = vsyncpa [#allocation4], 1

</llo_original>
